<compile_context>
chip_gen: v7x
topology: tpu7x:2x2x1
jax: 0.10.0
libtpu: 0.0.40
codegen_flags: <defaults>
</compile_context>

<pallas_src>
import functools

import jax
import jax.numpy as jnp
from jax.experimental import pallas as pl
from jax.experimental.pallas import tpu as pltpu

BN_EPS = 1e-5
SUBLANE = 8


def _round_up(x, m):
    return (x + m - 1) // m * m


# ----------------------------------------------------------------------------
# Pallas kernel:
#   layer0 = relu( sum_j onehot(x_cat_j) @ T_j  +  x_cont @ W0c + b0 )
#   then (Linear -> ReLU)* -> Linear    (all BN already folded into weights)
# ----------------------------------------------------------------------------
def make_tabular_kernel(n_cat, n_layers, compute_dtype):
    # ref order: x_cat, x_cont, T_0..T_{n_cat-1}, (W, b) x n_layers, out
    def kernel(x_cat_ref, x_cont_ref, *refs):
        o_ref = refs[-1]
        tables = refs[:n_cat]
        params = refs[n_cat:-1]

        ids = x_cat_ref[...]                                   # (tb, n_cat) i32
        xc = x_cont_ref[...].astype(compute_dtype)             # (tb, n_cont)

        # First layer: continuous part + fused-embedding one-hot matmuls.
        w0c = params[0][...]
        b0 = params[1][...]
        acc = jnp.dot(xc, w0c, preferred_element_type=jnp.float32) + b0
        for j in range(n_cat):
            tbl = tables[j][...]                               # (vocab_p, H0)
            vocab_p = tbl.shape[0]
            iota = jax.lax.broadcasted_iota(
                jnp.int32, (ids.shape[0], vocab_p), 1)
            oh = (iota == ids[:, j:j + 1]).astype(compute_dtype)
            acc = acc + jnp.dot(oh, tbl, preferred_element_type=jnp.float32)
        h = jnp.maximum(acc, 0.0)

        # Remaining hidden layers + output layer (BN folded into W/b).
        for li in range(1, n_layers):
            w = params[2 * li][...]
            b = params[2 * li + 1][...]
            z = jnp.dot(h.astype(w.dtype), w,
                        preferred_element_type=jnp.float32) + b
            h = jnp.maximum(z, 0.0) if li < n_layers - 1 else z

        o_ref[...] = h.astype(o_ref.dtype)

    return kernel


def tabular_mlp_pallas(prepared, x_cat, x_cont, *, tile_b=None):
    """Fused tabular forward.  prepared: output of prepare_inference_params."""
    B, n_cat = x_cat.shape
    n_cont = x_cont.shape[1]
    tables = prepared["tables"]
    weights = prepared["weights"]
    biases = prepared["biases"]
    n_layers = len(weights)
    out_sz = weights[-1].shape[1]
    compute_dtype = weights[0].dtype

    # Batch tile: big tiles amortize the ~0.35us per-grid-step overhead; 512
    # keeps >=2 parallel tiles (v7x dual-TC) once B >= 1024.
    if tile_b is None:
        tile_b = min(_round_up(B, SUBLANE), 512)
    tile_b = _round_up(tile_b, SUBLANE)
    b_pad = _round_up(B, tile_b)

    x_cat = x_cat.astype(jnp.int32)
    x_cont = x_cont.astype(jnp.float32)
    if b_pad != B:
        x_cat = jnp.pad(x_cat, ((0, b_pad - B), (0, 0)))    # index 0 is valid
        x_cont = jnp.pad(x_cont, ((0, b_pad - B), (0, 0)))

    args = [x_cat, x_cont] + list(tables)
    in_specs = [
        pl.BlockSpec((tile_b, n_cat), lambda i: (i, 0)),
        pl.BlockSpec((tile_b, n_cont), lambda i: (i, 0)),
    ]
    # Tables / weights / biases: full-extent blocks, constant index_map ->
    # VMEM-resident across all batch tiles.
    for t in tables:
        in_specs.append(pl.BlockSpec(t.shape, lambda i: (0, 0)))
    for w, b in zip(weights, biases):
        args += [w, b]
        in_specs += [pl.BlockSpec(w.shape, lambda i: (0, 0)),
                     pl.BlockSpec(b.shape, lambda i: (0, 0))]

    grid = (b_pad // tile_b,)

    # Cost estimate with true dims (vocab pads are only to the next sublane).
    flops = 2 * b_pad * (sum(t.shape[0] * t.shape[1] for t in tables)
                         + sum(w.shape[0] * w.shape[1] for w in weights))
    bytes_accessed = (sum(int(a.size) * a.dtype.itemsize for a in args)
                      + b_pad * out_sz * 4)

    out = pl.pallas_call(
        make_tabular_kernel(n_cat, n_layers, compute_dtype),
        out_shape=jax.ShapeDtypeStruct((b_pad, out_sz), jnp.float32),
        grid=grid,
        in_specs=in_specs,
        out_specs=pl.BlockSpec((tile_b, out_sz), lambda i: (i, 0)),
        compiler_params=pltpu.CompilerParams(
            dimension_semantics=("parallel",)),
        cost_estimate=pl.CostEstimate(
            flops=flops, transcendentals=0, bytes_accessed=bytes_accessed),
    )(*args)

    return out[:B, :out_sz]


# ----------------------------------------------------------------------------
# One-time (outside jit) BN folding + embedding-table fusion into Linear 0.
# ----------------------------------------------------------------------------
def prepare_inference_params(params, emb_szs, compute_dtype=jnp.bfloat16):
    hidden = params["hidden"]
    n_emb = sum(nf for _, nf in emb_szs)

    w0 = hidden[0]["w"].astype(jnp.float32)       # (n_emb + n_cont, H0)
    b0 = hidden[0]["b"].astype(jnp.float32)
    w0_emb = w0[:n_emb]
    w0_cont = w0[n_emb:]

    # bn_cont -> cont rows of Linear 0:  (x*sc + sh) @ Wc = x @ (diag(sc) Wc) + sh @ Wc
    sc = params["bn_cont_gamma"] / jnp.sqrt(params["bn_cont_var"] + BN_EPS)
    sh = params["bn_cont_beta"] - params["bn_cont_mean"] * sc
    w0_cont_eff = w0_cont * sc[:, None]
    b0_eff = b0 + sh @ w0_cont

    # Fuse each embedding table with its slice of W0:  T_j = E_j @ W0[rows_j]
    # (onehot(c) @ T_j == E_j[c] @ W0[rows_j]).  Vocab padded to a sublane
    # multiple with zero rows (exact).
    tables = []
    off = 0
    for tbl, (ni, nf) in zip(params["embeddings"], emb_szs):
        t = tbl.astype(jnp.float32) @ w0_emb[off:off + nf]    # (vocab, H0)
        vp = _round_up(ni, SUBLANE)
        t = jnp.zeros((vp, t.shape[1]), jnp.float32).at[:ni].set(t)
        tables.append(t.astype(compute_dtype))
        off += nf

    weights = [w0_cont_eff]
    biases = [b0_eff]
    # Hidden BN_{i-1} -> Linear_i:  (relu(h)*s + t) @ W = relu(h) @ (diag(s) W) + t @ W
    for i in range(1, len(hidden)):
        s = hidden[i - 1]["gamma"] / jnp.sqrt(hidden[i - 1]["var"] + BN_EPS)
        t = hidden[i - 1]["beta"] - hidden[i - 1]["mean"] * s
        wi = hidden[i]["w"].astype(jnp.float32)
        bi = hidden[i]["b"].astype(jnp.float32)
        weights.append(wi * s[:, None])
        biases.append(bi + t @ wi)
    # Last hidden BN -> output Linear.
    s = hidden[-1]["gamma"] / jnp.sqrt(hidden[-1]["var"] + BN_EPS)
    t = hidden[-1]["beta"] - hidden[-1]["mean"] * s
    wo = params["w_out"].astype(jnp.float32)
    bo = params["b_out"].astype(jnp.float32)
    weights.append(wo * s[:, None])
    biases.append(bo + t @ wo)

    return {
        "tables": tables,
        "weights": [w.astype(compute_dtype) for w in weights],
        "biases": [b.reshape(1, -1).astype(jnp.float32) for b in biases],
    }


# ----------------------------------------------------------------------------
# Parameter init (eval-mode BN running stats) + pure-JAX reference.
# ----------------------------------------------------------------------------
def init_params(key, emb_szs, n_cont, out_sz, layers):
    keys = jax.random.split(key, 64)
    ki = iter(range(64))

    params = {}
    params["embeddings"] = [
        jax.random.normal(keys[next(ki)], (ni, nf), dtype=jnp.float32)
        for ni, nf in emb_szs
    ]
    params["bn_cont_gamma"] = 1.0 + 0.1 * jax.random.normal(keys[next(ki)], (n_cont,))
    params["bn_cont_beta"] = 0.1 * jax.random.normal(keys[next(ki)], (n_cont,))
    params["bn_cont_mean"] = 0.1 * jax.random.normal(keys[next(ki)], (n_cont,))
    params["bn_cont_var"] = jnp.abs(jax.random.normal(keys[next(ki)], (n_cont,))) + 0.5

    n_emb = sum(nf for _, nf in emb_szs)
    n_in = n_emb + n_cont

    hidden = []
    for h in layers:
        bound = 1.0 / (n_in ** 0.5)
        w = jax.random.uniform(keys[next(ki)], (n_in, h), minval=-bound, maxval=bound)
        b = jax.random.uniform(keys[next(ki)], (h,), minval=-bound, maxval=bound)
        gamma = 1.0 + 0.1 * jax.random.normal(keys[next(ki)], (h,))
        beta = 0.1 * jax.random.normal(keys[next(ki)], (h,))
        mean = 0.1 * jax.random.normal(keys[next(ki)], (h,))
        var = jnp.abs(jax.random.normal(keys[next(ki)], (h,))) + 0.5
        hidden.append(dict(w=w.astype(jnp.float32), b=b.astype(jnp.float32),
                           gamma=gamma, beta=beta, mean=mean, var=var))
        n_in = h
    params["hidden"] = hidden

    bound = 1.0 / (layers[-1] ** 0.5)
    params["w_out"] = jax.random.uniform(
        keys[next(ki)], (layers[-1], out_sz), minval=-bound, maxval=bound
    ).astype(jnp.float32)
    params["b_out"] = jax.random.uniform(
        keys[next(ki)], (out_sz,), minval=-bound, maxval=bound
    ).astype(jnp.float32)
    return params


def tabular_model_ref(params, x_cat, x_cont):
    """Un-folded eval-mode semantics of the PyTorch TabularModel (dropout=id)."""
    embs = [tbl[x_cat[:, i]] for i, tbl in enumerate(params["embeddings"])]
    x = jnp.concatenate(embs, axis=1)
    sc = params["bn_cont_gamma"] / jnp.sqrt(params["bn_cont_var"] + BN_EPS)
    sh = params["bn_cont_beta"] - params["bn_cont_mean"] * sc
    x = jnp.concatenate([x, x_cont * sc + sh], axis=1)
    for lp in params["hidden"]:
        x = jnp.maximum(x @ lp["w"] + lp["b"], 0.0)
        x = (x - lp["mean"]) / jnp.sqrt(lp["var"] + BN_EPS) * lp["gamma"] + lp["beta"]
    return x @ params["w_out"] + params["b_out"]


if __name__ == "__main__":
    # Titanic-like config: cat columns ['Name','Sex','Embarked']
    cat_szs = [24, 2, 3]
    emb_szs = [(s, min(10, (s + 1) // 2)) for s in cat_szs]   # [(24,10),(2,1),(3,2)]
    n_cont = 6
    layers = [32, 16]
    out_sz = 2
    B = 16

    key = jax.random.PRNGKey(0)
    kp, kc, kx = jax.random.split(key, 3)
    params = init_params(kp, emb_szs, n_cont, out_sz, layers)

    x_cat = jnp.stack(
        [jax.random.randint(jax.random.fold_in(kc, i), (B,), 0, sz)
         for i, sz in enumerate(cat_szs)], axis=1
    ).astype(jnp.int32)                                             # [B, 3]
    x_cont = jax.random.normal(kx, (B, n_cont), dtype=jnp.float32)  # [B, 6]

    # Fold BN + fuse embedding tables ONCE, outside the jitted forward.
    prepared = prepare_inference_params(params, emb_szs,
                                        compute_dtype=jnp.bfloat16)

    fwd = jax.jit(tabular_mlp_pallas)   # tile_b heuristic -> single 16-row tile
    out = jax.block_until_ready(fwd(prepared, x_cat, x_cont))

    ref = tabular_model_ref(params, x_cat, x_cont)
    assert out.shape == (B, out_sz), out.shape
    # bf16 matmul operands (f32 accumulation) -> looser tolerance than pure f32.
    assert jnp.allclose(out, ref, atol=5e-2, rtol=5e-2), "mismatch vs reference"

    print("KERNEL_OK")
</pallas_src>

<mosaic_0001>
module attributes {stable_mosaic.version = 11 : i64} {
  func.func @kernel(%arg0: i32, %arg1: memref<16x3xi32, #tpu.memory_space<vmem>>, %arg2: memref<16x6xf32, #tpu.memory_space<vmem>>, %arg3: memref<24x32xbf16, #tpu.memory_space<vmem>>, %arg4: memref<8x32xbf16, #tpu.memory_space<vmem>>, %arg5: memref<8x32xbf16, #tpu.memory_space<vmem>>, %arg6: memref<6x32xbf16, #tpu.memory_space<vmem>>, %arg7: memref<1x32xf32, #tpu.memory_space<vmem>>, %arg8: memref<32x16xbf16, #tpu.memory_space<vmem>>, %arg9: memref<1x16xf32, #tpu.memory_space<vmem>>, %arg10: memref<16x2xbf16, #tpu.memory_space<vmem>>, %arg11: memref<1x2xf32, #tpu.memory_space<vmem>>, %arg12: memref<16x2xf32, #tpu.memory_space<vmem>>) attributes {dimension_semantics = [#tpu.dimension_semantics<parallel>], iteration_bounds = array<i64: 1>, scalar_prefetch = 0 : i64, scratch_operands = 0 : i64, tpu.core_type = #tpu.core_type<tc>, window_params = [{transform_indices = @transform_0, window_bounds = array<i64: 16, 3>}, {transform_indices = @transform_1, window_bounds = array<i64: 16, 6>}, {pipeline_mode = #tpu.pipeline_mode<synchronous>, transform_indices = @transform_2, window_bounds = array<i64: 24, 32>}, {pipeline_mode = #tpu.pipeline_mode<synchronous>, transform_indices = @transform_3, window_bounds = array<i64: 8, 32>}, {pipeline_mode = #tpu.pipeline_mode<synchronous>, transform_indices = @transform_4, window_bounds = array<i64: 8, 32>}, {pipeline_mode = #tpu.pipeline_mode<synchronous>, transform_indices = @transform_5, window_bounds = array<i64: 6, 32>}, {pipeline_mode = #tpu.pipeline_mode<synchronous>, transform_indices = @transform_6, window_bounds = array<i64: 1, 32>}, {pipeline_mode = #tpu.pipeline_mode<synchronous>, transform_indices = @transform_7, window_bounds = array<i64: 32, 16>}, {pipeline_mode = #tpu.pipeline_mode<synchronous>, transform_indices = @transform_8, window_bounds = array<i64: 1, 16>}, {pipeline_mode = #tpu.pipeline_mode<synchronous>, transform_indices = @transform_9, window_bounds = array<i64: 16, 2>}, {pipeline_mode = #tpu.pipeline_mode<synchronous>, transform_indices = @transform_10, window_bounds = array<i64: 1, 2>}, {transform_indices = @transform_11, window_bounds = array<i64: 16, 2>}]} {
    %c0 = arith.constant 0 : index
    %c0_0 = arith.constant 0 : index
    %0 = vector.load %arg1[%c0, %c0_0] : memref<16x3xi32, #tpu.memory_space<vmem>>, vector<16x3xi32>
    %c0_1 = arith.constant 0 : index
    %c0_2 = arith.constant 0 : index
    %1 = vector.load %arg2[%c0_1, %c0_2] : memref<16x6xf32, #tpu.memory_space<vmem>>, vector<16x6xf32>
    %2 = arith.truncf %1 : vector<16x6xf32> to vector<16x6xbf16>
    %c0_3 = arith.constant 0 : index
    %c0_4 = arith.constant 0 : index
    %3 = vector.load %arg6[%c0_3, %c0_4] : memref<6x32xbf16, #tpu.memory_space<vmem>>, vector<6x32xbf16>
    %c0_5 = arith.constant 0 : index
    %c0_6 = arith.constant 0 : index
    %4 = vector.load %arg7[%c0_5, %c0_6] : memref<1x32xf32, #tpu.memory_space<vmem>>, vector<1x32xf32>
    %cst = arith.constant dense<0.000000e+00> : vector<16x32xf32>
    %5 = tpu.matmul %2, %3, %cst {dimension_numbers = #tpu.dot_dimension_numbers<[1], [0], [0], [1], [0, 0, 1, 1], [], []>} : vector<16x6xbf16>, vector<6x32xbf16>, vector<16x32xf32> -> vector<16x32xf32>
    %6 = vector.broadcast %4 : vector<1x32xf32> to vector<16x32xf32>
    %7 = arith.addf %5, %6 : vector<16x32xf32>
    %c0_7 = arith.constant 0 : index
    %c0_8 = arith.constant 0 : index
    %8 = vector.load %arg3[%c0_7, %c0_8] : memref<24x32xbf16, #tpu.memory_space<vmem>>, vector<24x32xbf16>
    %9 = tpu.iota {dimensions = array<i32: 1>} : vector<16x24xi32>
    %10 = vector.extract_strided_slice %0 {offsets = [0, 0], sizes = [16, 1], strides = [1, 1]} : vector<16x3xi32> to vector<16x1xi32>
    %11 = vector.broadcast %10 : vector<16x1xi32> to vector<16x24xi32>
    %12 = arith.cmpi eq, %9, %11 : vector<16x24xi32>
    %13 = arith.extui %12 : vector<16x24xi1> to vector<16x24xi32>
    %14 = arith.sitofp %13 : vector<16x24xi32> to vector<16x24xf32>
    %15 = arith.truncf %14 : vector<16x24xf32> to vector<16x24xbf16>
    %cst_9 = arith.constant dense<0.000000e+00> : vector<16x32xf32>
    %16 = tpu.matmul %15, %8, %cst_9 {dimension_numbers = #tpu.dot_dimension_numbers<[1], [0], [0], [1], [0, 0, 1, 1], [], []>} : vector<16x24xbf16>, vector<24x32xbf16>, vector<16x32xf32> -> vector<16x32xf32>
    %17 = arith.addf %7, %16 : vector<16x32xf32>
    %c0_10 = arith.constant 0 : index
    %c0_11 = arith.constant 0 : index
    %18 = vector.load %arg4[%c0_10, %c0_11] : memref<8x32xbf16, #tpu.memory_space<vmem>>, vector<8x32xbf16>
    %19 = tpu.iota {dimensions = array<i32: 1>} : vector<16x8xi32>
    %20 = vector.extract_strided_slice %0 {offsets = [0, 1], sizes = [16, 1], strides = [1, 1]} : vector<16x3xi32> to vector<16x1xi32>
    %21 = vector.broadcast %20 : vector<16x1xi32> to vector<16x8xi32>
    %22 = arith.cmpi eq, %19, %21 : vector<16x8xi32>
    %23 = arith.extui %22 : vector<16x8xi1> to vector<16x8xi32>
    %24 = arith.sitofp %23 : vector<16x8xi32> to vector<16x8xf32>
    %25 = arith.truncf %24 : vector<16x8xf32> to vector<16x8xbf16>
    %cst_12 = arith.constant dense<0.000000e+00> : vector<16x32xf32>
    %26 = tpu.matmul %25, %18, %cst_12 {dimension_numbers = #tpu.dot_dimension_numbers<[1], [0], [0], [1], [0, 0, 1, 1], [], []>} : vector<16x8xbf16>, vector<8x32xbf16>, vector<16x32xf32> -> vector<16x32xf32>
    %27 = arith.addf %17, %26 : vector<16x32xf32>
    %c0_13 = arith.constant 0 : index
    %c0_14 = arith.constant 0 : index
    %28 = vector.load %arg5[%c0_13, %c0_14] : memref<8x32xbf16, #tpu.memory_space<vmem>>, vector<8x32xbf16>
    %29 = tpu.iota {dimensions = array<i32: 1>} : vector<16x8xi32>
    %30 = vector.extract_strided_slice %0 {offsets = [0, 2], sizes = [16, 1], strides = [1, 1]} : vector<16x3xi32> to vector<16x1xi32>
    %31 = vector.broadcast %30 : vector<16x1xi32> to vector<16x8xi32>
    %32 = arith.cmpi eq, %29, %31 : vector<16x8xi32>
    %33 = arith.extui %32 : vector<16x8xi1> to vector<16x8xi32>
    %34 = arith.sitofp %33 : vector<16x8xi32> to vector<16x8xf32>
    %35 = arith.truncf %34 : vector<16x8xf32> to vector<16x8xbf16>
    %cst_15 = arith.constant dense<0.000000e+00> : vector<16x32xf32>
    %36 = tpu.matmul %35, %28, %cst_15 {dimension_numbers = #tpu.dot_dimension_numbers<[1], [0], [0], [1], [0, 0, 1, 1], [], []>} : vector<16x8xbf16>, vector<8x32xbf16>, vector<16x32xf32> -> vector<16x32xf32>
    %37 = arith.addf %27, %36 : vector<16x32xf32>
    %cst_16 = arith.constant 0.000000e+00 : f32
    %38 = vector.broadcast %cst_16 : f32 to vector<16x32xf32>
    %39 = arith.maximumf %37, %38 : vector<16x32xf32>
    %c0_17 = arith.constant 0 : index
    %c0_18 = arith.constant 0 : index
    %40 = vector.load %arg8[%c0_17, %c0_18] : memref<32x16xbf16, #tpu.memory_space<vmem>>, vector<32x16xbf16>
    %c0_19 = arith.constant 0 : index
    %c0_20 = arith.constant 0 : index
    %41 = vector.load %arg9[%c0_19, %c0_20] : memref<1x16xf32, #tpu.memory_space<vmem>>, vector<1x16xf32>
    %42 = arith.truncf %39 : vector<16x32xf32> to vector<16x32xbf16>
    %cst_21 = arith.constant dense<0.000000e+00> : vector<16x16xf32>
    %43 = tpu.matmul %42, %40, %cst_21 {dimension_numbers = #tpu.dot_dimension_numbers<[1], [0], [0], [1], [0, 0, 1, 1], [], []>} : vector<16x32xbf16>, vector<32x16xbf16>, vector<16x16xf32> -> vector<16x16xf32>
    %44 = vector.broadcast %41 : vector<1x16xf32> to vector<16x16xf32>
    %45 = arith.addf %43, %44 : vector<16x16xf32>
    %cst_22 = arith.constant 0.000000e+00 : f32
    %46 = vector.broadcast %cst_22 : f32 to vector<16x16xf32>
    %47 = arith.maximumf %45, %46 : vector<16x16xf32>
    %c0_23 = arith.constant 0 : index
    %c0_24 = arith.constant 0 : index
    %48 = vector.load %arg10[%c0_23, %c0_24] : memref<16x2xbf16, #tpu.memory_space<vmem>>, vector<16x2xbf16>
    %c0_25 = arith.constant 0 : index
    %c0_26 = arith.constant 0 : index
    %49 = vector.load %arg11[%c0_25, %c0_26] : memref<1x2xf32, #tpu.memory_space<vmem>>, vector<1x2xf32>
    %50 = arith.truncf %47 : vector<16x16xf32> to vector<16x16xbf16>
    %cst_27 = arith.constant dense<0.000000e+00> : vector<16x2xf32>
    %51 = tpu.matmul %50, %48, %cst_27 {dimension_numbers = #tpu.dot_dimension_numbers<[1], [0], [0], [1], [0, 0, 1, 1], [], []>} : vector<16x16xbf16>, vector<16x2xbf16>, vector<16x2xf32> -> vector<16x2xf32>
    %52 = vector.broadcast %49 : vector<1x2xf32> to vector<16x2xf32>
    %53 = arith.addf %51, %52 : vector<16x2xf32>
    %c0_28 = arith.constant 0 : index
    %c0_29 = arith.constant 0 : index
    %54 = vector.load %arg12[%c0_28, %c0_29] : memref<16x2xf32, #tpu.memory_space<vmem>>, vector<16x2xf32>
    tpu.vector_store %arg12[%c0_28, %c0_29], %53 {strides = array<i32>} : memref<16x2xf32, #tpu.memory_space<vmem>>, vector<16x2xf32>,
    return
  }
  func.func @transform_0(%arg0: i32) -> (i32, i32) {
    %c0_i32 = arith.constant 0 : i32
    %c0_i32_0 = arith.constant 0 : i32
    return %arg0, %c0_i32 : i32, i32
  }
  func.func @transform_1(%arg0: i32) -> (i32, i32) {
    %c0_i32 = arith.constant 0 : i32
    %c0_i32_0 = arith.constant 0 : i32
    return %arg0, %c0_i32 : i32, i32
  }
  func.func @transform_2(%arg0: i32) -> (i32, i32) {
    %c0_i32 = arith.constant 0 : i32
    %c0_i32_0 = arith.constant 0 : i32
    %c0_i32_1 = arith.constant 0 : i32
    return %c0_i32, %c0_i32_0 : i32, i32
  }
  func.func @transform_3(%arg0: i32) -> (i32, i32) {
    %c0_i32 = arith.constant 0 : i32
    %c0_i32_0 = arith.constant 0 : i32
    %c0_i32_1 = arith.constant 0 : i32
    return %c0_i32, %c0_i32_0 : i32, i32
  }
  func.func @transform_4(%arg0: i32) -> (i32, i32) {
    %c0_i32 = arith.constant 0 : i32
    %c0_i32_0 = arith.constant 0 : i32
    %c0_i32_1 = arith.constant 0 : i32
    return %c0_i32, %c0_i32_0 : i32, i32
  }
  func.func @transform_5(%arg0: i32) -> (i32, i32) {
    %c0_i32 = arith.constant 0 : i32
    %c0_i32_0 = arith.constant 0 : i32
    %c0_i32_1 = arith.constant 0 : i32
    return %c0_i32, %c0_i32_0 : i32, i32
  }
  func.func @transform_6(%arg0: i32) -> (i32, i32) {
    %c0_i32 = arith.constant 0 : i32
    %c0_i32_0 = arith.constant 0 : i32
    %c0_i32_1 = arith.constant 0 : i32
    return %c0_i32, %c0_i32_0 : i32, i32
  }
  func.func @transform_7(%arg0: i32) -> (i32, i32) {
    %c0_i32 = arith.constant 0 : i32
    %c0_i32_0 = arith.constant 0 : i32
    %c0_i32_1 = arith.constant 0 : i32
    return %c0_i32, %c0_i32_0 : i32, i32
  }
  func.func @transform_8(%arg0: i32) -> (i32, i32) {
    %c0_i32 = arith.constant 0 : i32
    %c0_i32_0 = arith.constant 0 : i32
    %c0_i32_1 = arith.constant 0 : i32
    return %c0_i32, %c0_i32_0 : i32, i32
  }
  func.func @transform_9(%arg0: i32) -> (i32, i32) {
    %c0_i32 = arith.constant 0 : i32
    %c0_i32_0 = arith.constant 0 : i32
    %c0_i32_1 = arith.constant 0 : i32
    return %c0_i32, %c0_i32_0 : i32, i32
  }
  func.func @transform_10(%arg0: i32) -> (i32, i32) {
    %c0_i32 = arith.constant 0 : i32
    %c0_i32_0 = arith.constant 0 : i32
    %c0_i32_1 = arith.constant 0 : i32
    return %c0_i32, %c0_i32_0 : i32, i32
  }
  func.func @transform_11(%arg0: i32) -> (i32, i32) {
    %c0_i32 = arith.constant 0 : i32
    %c0_i32_0 = arith.constant 0 : i32
    return %arg0, %c0_i32 : i32, i32
  }
}

</mosaic_0001>

<llo_original>
// kernel: tabular_mlp_pallas.1
$region0: #{tabular_mlp_pallas.1}
  #allocation0 [shape = 'u32[]', space=smem, size = 0x4, offset = 0x4, fixed_abs, tag = 'smem constant byte address 0x4 - core index']
  #allocation1 [shape = 'u32[144,128]{1,0:T(1,128)}', space=vmem, size = 0x12000, scoped, tag = 'internal scratch']
  %s0 = inlined_call_operand.vmem [shape: s32[16,3], index: 0, kind: input, shape index: {}]
  %s1 = inlined_call_operand.vmem [shape: f32[16,6], index: 1, kind: input, shape index: {}]
  %s2 = inlined_call_operand.vmem [shape: bf16[24,32], index: 2, kind: input, shape index: {}]
  %s3 = inlined_call_operand.vmem [shape: bf16[8,32], index: 3, kind: input, shape index: {}]
  %s4 = inlined_call_operand.vmem [shape: bf16[8,32], index: 4, kind: input, shape index: {}]
  %s5 = inlined_call_operand.vmem [shape: bf16[6,32], index: 5, kind: input, shape index: {}]
  %s6 = inlined_call_operand.vmem [shape: f32[1,32], index: 6, kind: input, shape index: {}]
  %s7 = inlined_call_operand.vmem [shape: bf16[32,16], index: 7, kind: input, shape index: {}]
  %s8 = inlined_call_operand.vmem [shape: f32[1,16], index: 8, kind: input, shape index: {}]
  %s9 = inlined_call_operand.vmem [shape: bf16[16,2], index: 9, kind: input, shape index: {}]
  %s10 = inlined_call_operand.vmem [shape: f32[1,2], index: 10, kind: input, shape index: {}]
  %s11 = inlined_call_operand.vmem [shape: f32[16,2], index: 11, kind: output, shape index: {}]
  %s12 = sld [smem:[#allocation0]]
  $region54: #{tabular_mlp_pallas.1} parent=0
    _
  %s14 = ssub.s32 1, %s12
  %s15 = scalar_select 0, %s14, %s12
  // Predicated region
  $region2: #{tabular_mlp_pallas.1} parent=0 // pred_check
    _
  $region3: #{tabular_mlp_pallas.1} parent=0 // pred_check_branch
    %17 = sbr.rel (0) target = $region5
  $region4: #{tabular_mlp_pallas.1} parent=0 // pred_region
    _
  $region5: #{tabular_mlp_pallas.1} parent=0 // pred_fallthru
    _
  // Predicated region
  $region6: #{tabular_mlp_pallas.1} parent=0 // pred_check
    _
  $region7: #{tabular_mlp_pallas.1} parent=0 // pred_check_branch
    %19 = sbr.rel (0) target = $region9
  $region8: #{tabular_mlp_pallas.1} parent=0 // pred_region
    _
  $region9: #{tabular_mlp_pallas.1} parent=0 // pred_fallthru
    _
  // Predicated region
  $region10: #{tabular_mlp_pallas.1} parent=0 // pred_check
    _
  $region11: #{tabular_mlp_pallas.1} parent=0 // pred_check_branch
    %21 = sbr.rel (0) target = $region13
  $region12: #{tabular_mlp_pallas.1} parent=0 // pred_region
    _
  $region13: #{tabular_mlp_pallas.1} parent=0 // pred_fallthru
    _
  // Predicated region
  $region14: #{tabular_mlp_pallas.1} parent=0 // pred_check
    _
  $region15: #{tabular_mlp_pallas.1} parent=0 // pred_check_branch
    %23 = sbr.rel (0) target = $region17
  $region16: #{tabular_mlp_pallas.1} parent=0 // pred_region
    _
  $region17: #{tabular_mlp_pallas.1} parent=0 // pred_fallthru
    _
  // Predicated region
  $region18: #{tabular_mlp_pallas.1} parent=0 // pred_check
    _
  $region19: #{tabular_mlp_pallas.1} parent=0 // pred_check_branch
    %25 = sbr.rel (0) target = $region21
  $region20: #{tabular_mlp_pallas.1} parent=0 // pred_region
    _
  $region21: #{tabular_mlp_pallas.1} parent=0 // pred_fallthru
    _
  // Predicated region
  $region22: #{tabular_mlp_pallas.1} parent=0 // pred_check
    _
  $region23: #{tabular_mlp_pallas.1} parent=0 // pred_check_branch
    %27 = sbr.rel (0) target = $region25
  $region24: #{tabular_mlp_pallas.1} parent=0 // pred_region
    _
  $region25: #{tabular_mlp_pallas.1} parent=0 // pred_fallthru
    _
  // Predicated region
  $region26: #{tabular_mlp_pallas.1} parent=0 // pred_check
    _
  $region27: #{tabular_mlp_pallas.1} parent=0 // pred_check_branch
    %29 = sbr.rel (0) target = $region29
  $region28: #{tabular_mlp_pallas.1} parent=0 // pred_region
    _
  $region29: #{tabular_mlp_pallas.1} parent=0 // pred_fallthru
    _
  // Predicated region
  $region30: #{tabular_mlp_pallas.1} parent=0 // pred_check
    _
  $region31: #{tabular_mlp_pallas.1} parent=0 // pred_check_branch
    %31 = sbr.rel (0) target = $region33
  $region32: #{tabular_mlp_pallas.1} parent=0 // pred_region
    _
  $region33: #{tabular_mlp_pallas.1} parent=0 // pred_fallthru
    _
  // Predicated region
  $region34: #{tabular_mlp_pallas.1} parent=0 // pred_check
    _
  $region35: #{tabular_mlp_pallas.1} parent=0 // pred_check_branch
    %33 = sbr.rel (0) target = $region37
  $region36: #{tabular_mlp_pallas.1} parent=0 // pred_region
    _
  $region37: #{tabular_mlp_pallas.1} parent=0 // pred_fallthru
    _
  // Predicated region
  $region38: #{tabular_mlp_pallas.1} parent=0 // pred_check
    _
  $region39: #{tabular_mlp_pallas.1} parent=0 // pred_check_branch
    %35 = sbr.rel (0) target = $region41
  $region40: #{tabular_mlp_pallas.1} parent=0 // pred_region
    _
  $region41: #{tabular_mlp_pallas.1} parent=0 // pred_fallthru
    _
  // Predicated region
  $region42: #{tabular_mlp_pallas.1} parent=0 // pred_check
    _
  $region43: #{tabular_mlp_pallas.1} parent=0 // pred_check_branch
    %37 = sbr.rel (0) target = $region45
  $region44: #{tabular_mlp_pallas.1} parent=0 // pred_region
    _
  $region45: #{tabular_mlp_pallas.1} parent=0 // pred_fallthru
    _
  %v39 = vld [vmem:[%s0] sm:$0xff]
  %v40 = vld [vmem:[%s0 + $0x8] sm:$0xff]
  %v41 = vld [vmem:[%s1] sm:$0xff]
  %v42 = vld [vmem:[%s1 + $0x8] sm:$0xff]
  %v43 = vpack.c.bf16 %v42, %v41
  %v44 = vld [vmem:[%s5] sm:$0x7]
  %v45 = vld [vmem:[%s6] sm:$0x1]
  %v47 = vlaneseq
  %v48 = vshrl.u32 %v47, 7
  %v49 = vsub.s32 0, %v48
  %v50 = vrot.slane %v45, %v49
  %vm52 = vcmask 48128
  %v54 = vsel %vm52, %v43, 0
  %vm56 = vcmask 1042432
  %v58 = vsel %vm56, %v44, 0
  %60 = vmatprep.subr.bf16.mxu0 0
  %61 = vmatpush1.bf16.msra.mxu0 %v58
  %62 = vmatprep.subr.bf16.mxu0 0
  %63 = vmatpush1.bf16.msra.mxu0 0
  %64 = vmatprep.subr.bf16.mxu0 0
  %65 = vmatpush1.bf16.msra.mxu0 0
  %66 = vmatprep.subr.bf16.mxu0 0
  %67 = vmatpush1.bf16.msra.mxu0 0
  %68 = vmatprep.subr.bf16.mxu0 0
  %69 = vmatpush1.bf16.msra.mxu0 0
  %70 = vmatprep.subr.bf16.mxu0 0
  %71 = vmatpush1.bf16.msra.mxu0 0
  %72 = vmatprep.subr.bf16.mxu0 0
  %73 = vmatpush1.bf16.msra.mxu0 0
  %74 = vmatprep.subr.bf16.mxu0 0
  %75 = vmatpush1.bf16.msra.mxu0 0
  %76 = vmatprep.subr.bf16.mxu0 0
  %77 = vmatpush1.bf16.msra.mxu0 0
  %78 = vmatprep.subr.bf16.mxu0 0
  %79 = vmatpush1.bf16.msra.mxu0 0
  %80 = vmatprep.subr.bf16.mxu0 0
  %81 = vmatpush1.bf16.msra.mxu0 0
  %82 = vmatprep.subr.bf16.mxu0 0
  %83 = vmatpush1.bf16.msra.mxu0 0
  %84 = vmatprep.subr.bf16.mxu0 0
  %85 = vmatpush1.bf16.msra.mxu0 0
  %86 = vmatprep.subr.bf16.mxu0 0
  %87 = vmatpush1.bf16.msra.mxu0 0
  %88 = vmatprep.subr.bf16.mxu0 0
  %89 = vmatpush1.bf16.msra.mxu0 0
  %90 = vmatprep.subr.bf16.mxu0 0
  %91 = vmatpush1.bf16.msra.mxu0 0
  %92 = vmatprep.mubr.bf16.mxu0 0
  %93 = vmatmul.mubr.bf16.gmra.mrb[0].mxu0 %v54
  %v94 = vpop.f32.mrb[0].mxu0
  %v95 = vadd.f32 %v50, %v94
  %v96 = vpop.f32.mrb[0].mxu0
  %v97 = vpop.f32.mrb[0].mxu0
  %v98 = vadd.f32 %v50, %v97
  %v99 = vpop.f32.mrb[0].mxu0
  %100 = vdwg.mxu0
  %v101 = vld [vmem:[%s2] sm:$0xf]
  %v102 = vld [vmem:[%s2 + $0x4] sm:$0xf]
  %v103 = vld [vmem:[%s2 + $0x8] sm:$0xf]
  %v104 = vlaneseq
  %v105 = vand.u32 %v104, 127
  %106 = vset.pattern.permute.xlu0 0
  %107 = vperm.xlu0 %106, %v39
  %v108 = vpop.permute.xlu0 %107
  %109 = vset.pattern.permute.xlu0 0
  %110 = vperm.xlu0 %109, %v40
  %v111 = vpop.permute.xlu0 %110
  %vm112 = vcmp.eq.s32.totalorder %v105, %v108
  %vm113 = vcmp.eq.s32.totalorder %v105, %v111
  %v114 = vsel %vm112, 1, 0
  %v115 = vsel %vm113, 1, 0
  %v116 = vcvt.s32.f32 %v114
  %v117 = vcvt.s32.f32 %v115
  %v118 = vpack.c.bf16 %v117, %v116
  %v122 = vunpack.c.l.b16 %v101
  %v123 = vunpack.c.l.b16 %v102
  %v124 = vunpack.c.l.b16 %v103
  %v125 = vpack.c.b16 %v123, %v122
  %v126 = vpack.c.b16 %v124, %v124
  %vm128 = vcmask 195584
  %v130 = vsel %vm128, %v118, 0
  %vm132 = vcmask 1043456
  %v134 = vsel %vm132, %v126, 0
  %136 = vmatprep.subr.bf16.mxu0 0
  %137 = vmatpush1.bf16.msra.mxu0 %v125
  %138 = vmatprep.subr.bf16.mxu0 0
  %139 = vmatpush1.bf16.msra.mxu0 %v134
  %140 = vmatprep.subr.bf16.mxu0 0
  %141 = vmatpush1.bf16.msra.mxu0 0
  %142 = vmatprep.subr.bf16.mxu0 0
  %143 = vmatpush1.bf16.msra.mxu0 0
  %144 = vmatprep.subr.bf16.mxu0 0
  %145 = vmatpush1.bf16.msra.mxu0 0
  %146 = vmatprep.subr.bf16.mxu0 0
  %147 = vmatpush1.bf16.msra.mxu0 0
  %148 = vmatprep.subr.bf16.mxu0 0
  %149 = vmatpush1.bf16.msra.mxu0 0
  %150 = vmatprep.subr.bf16.mxu0 0
  %151 = vmatpush1.bf16.msra.mxu0 0
  %152 = vmatprep.subr.bf16.mxu0 0
  %153 = vmatpush1.bf16.msra.mxu0 0
  %154 = vmatprep.subr.bf16.mxu0 0
  %155 = vmatpush1.bf16.msra.mxu0 0
  %156 = vmatprep.subr.bf16.mxu0 0
  %157 = vmatpush1.bf16.msra.mxu0 0
  %158 = vmatprep.subr.bf16.mxu0 0
  %159 = vmatpush1.bf16.msra.mxu0 0
  %160 = vmatprep.subr.bf16.mxu0 0
  %161 = vmatpush1.bf16.msra.mxu0 0
  %162 = vmatprep.subr.bf16.mxu0 0
  %163 = vmatpush1.bf16.msra.mxu0 0
  %164 = vmatprep.subr.bf16.mxu0 0
  %165 = vmatpush1.bf16.msra.mxu0 0
  %166 = vmatprep.subr.bf16.mxu0 0
  %167 = vmatpush1.bf16.msra.mxu0 0
  %168 = vmatprep.mubr.bf16.mxu0 0
  %169 = vmatmul.mubr.bf16.gmra.mrb[0].mxu0 %v130
  %v170 = vpop.f32.mrb[0].mxu0
  %v171 = vadd.f32 0.0, %v170
  %v172 = vpop.f32.mrb[0].mxu0
  %v173 = vpop.f32.mrb[0].mxu0
  %v174 = vadd.f32 0.0, %v173
  %v175 = vpop.f32.mrb[0].mxu0
  %176 = vdwg.mxu0
  %v177 = vadd.f32 %v95, %v171
  %v178 = vadd.f32 %v98, %v174
  %v179 = vld [vmem:[%s3] sm:$0xf]
  %180 = vset.pattern.permute.xlu0 1
  %181 = vperm.xlu0 %180, %v39
  %v182 = vpop.permute.xlu0 %181
  %183 = vset.pattern.permute.xlu0 1
  %184 = vperm.xlu0 %183, %v40
  %v185 = vpop.permute.xlu0 %184
  %vm186 = vcmp.eq.s32.totalorder %v105, %v182
  %vm187 = vcmp.eq.s32.totalorder %v105, %v185
  %v188 = vsel %vm186, 1, 0
  %v189 = vsel %vm187, 1, 0
  %v190 = vcvt.s32.f32 %v188
  %v191 = vcvt.s32.f32 %v189
  %v192 = vpack.c.bf16 %v191, %v190
  %vm193 = vcmask 64512
  %v195 = vsel %vm193, %v192, 0
  %v198 = vsel %vm132, %v179, 0
  %200 = vmatprep.subr.bf16.mxu0 0
  %201 = vmatpush1.bf16.msra.mxu0 %v198
  %202 = vmatprep.subr.bf16.mxu0 0
  %203 = vmatpush1.bf16.msra.mxu0 0
  %204 = vmatprep.subr.bf16.mxu0 0
  %205 = vmatpush1.bf16.msra.mxu0 0
  %206 = vmatprep.subr.bf16.mxu0 0
  %207 = vmatpush1.bf16.msra.mxu0 0
  %208 = vmatprep.subr.bf16.mxu0 0
  %209 = vmatpush1.bf16.msra.mxu0 0
  %210 = vmatprep.subr.bf16.mxu0 0
  %211 = vmatpush1.bf16.msra.mxu0 0
  %212 = vmatprep.subr.bf16.mxu0 0
  %213 = vmatpush1.bf16.msra.mxu0 0
  %214 = vmatprep.subr.bf16.mxu0 0
  %215 = vmatpush1.bf16.msra.mxu0 0
  %216 = vmatprep.subr.bf16.mxu0 0
  %217 = vmatpush1.bf16.msra.mxu0 0
  %218 = vmatprep.subr.bf16.mxu0 0
  %219 = vmatpush1.bf16.msra.mxu0 0
  %220 = vmatprep.subr.bf16.mxu0 0
  %221 = vmatpush1.bf16.msra.mxu0 0
  %222 = vmatprep.subr.bf16.mxu0 0
  %223 = vmatpush1.bf16.msra.mxu0 0
  %224 = vmatprep.subr.bf16.mxu0 0
  %225 = vmatpush1.bf16.msra.mxu0 0
  %226 = vmatprep.subr.bf16.mxu0 0
  %227 = vmatpush1.bf16.msra.mxu0 0
  %228 = vmatprep.subr.bf16.mxu0 0
  %229 = vmatpush1.bf16.msra.mxu0 0
  %230 = vmatprep.subr.bf16.mxu0 0
  %231 = vmatpush1.bf16.msra.mxu0 0
  %232 = vmatprep.mubr.bf16.mxu0 0
  %233 = vmatmul.mubr.bf16.gmra.mrb[0].mxu0 %v195
  %v234 = vpop.f32.mrb[0].mxu0
  %v235 = vadd.f32 0.0, %v234
  %v236 = vpop.f32.mrb[0].mxu0
  %v237 = vpop.f32.mrb[0].mxu0
  %v238 = vadd.f32 0.0, %v237
  %v239 = vpop.f32.mrb[0].mxu0
  %240 = vdwg.mxu0
  %v241 = vadd.f32 %v177, %v235
  %v242 = vadd.f32 %v178, %v238
  %v243 = vld [vmem:[%s4] sm:$0xf]
  %244 = vset.pattern.permute.xlu0 2
  %245 = vperm.xlu0 %244, %v39
  %v246 = vpop.permute.xlu0 %245
  %247 = vset.pattern.permute.xlu0 2
  %248 = vperm.xlu0 %247, %v40
  %v249 = vpop.permute.xlu0 %248
  %vm250 = vcmp.eq.s32.totalorder %v105, %v246
  %vm251 = vcmp.eq.s32.totalorder %v105, %v249
  %v252 = vsel %vm250, 1, 0
  %v253 = vsel %vm251, 1, 0
  %v254 = vcvt.s32.f32 %v252
  %v255 = vcvt.s32.f32 %v253
  %v256 = vpack.c.bf16 %v255, %v254
  %v258 = vsel %vm193, %v256, 0
  %v261 = vsel %vm132, %v243, 0
  %263 = vmatprep.subr.bf16.mxu0 0
  %264 = vmatpush1.bf16.msra.mxu0 %v261
  %265 = vmatprep.subr.bf16.mxu0 0
  %266 = vmatpush1.bf16.msra.mxu0 0
  %267 = vmatprep.subr.bf16.mxu0 0
  %268 = vmatpush1.bf16.msra.mxu0 0
  %269 = vmatprep.subr.bf16.mxu0 0
  %270 = vmatpush1.bf16.msra.mxu0 0
  %271 = vmatprep.subr.bf16.mxu0 0
  %272 = vmatpush1.bf16.msra.mxu0 0
  %273 = vmatprep.subr.bf16.mxu0 0
  %274 = vmatpush1.bf16.msra.mxu0 0
  %275 = vmatprep.subr.bf16.mxu0 0
  %276 = vmatpush1.bf16.msra.mxu0 0
  %277 = vmatprep.subr.bf16.mxu0 0
  %278 = vmatpush1.bf16.msra.mxu0 0
  %279 = vmatprep.subr.bf16.mxu0 0
  %280 = vmatpush1.bf16.msra.mxu0 0
  %281 = vmatprep.subr.bf16.mxu0 0
  %282 = vmatpush1.bf16.msra.mxu0 0
  %283 = vmatprep.subr.bf16.mxu0 0
  %284 = vmatpush1.bf16.msra.mxu0 0
  %285 = vmatprep.subr.bf16.mxu0 0
  %286 = vmatpush1.bf16.msra.mxu0 0
  %287 = vmatprep.subr.bf16.mxu0 0
  %288 = vmatpush1.bf16.msra.mxu0 0
  %289 = vmatprep.subr.bf16.mxu0 0
  %290 = vmatpush1.bf16.msra.mxu0 0
  %291 = vmatprep.subr.bf16.mxu0 0
  %292 = vmatpush1.bf16.msra.mxu0 0
  %293 = vmatprep.subr.bf16.mxu0 0
  %294 = vmatpush1.bf16.msra.mxu0 0
  %295 = vmatprep.mubr.bf16.mxu0 0
  %296 = vmatmul.mubr.bf16.gmra.mrb[0].mxu0 %v258
  %v297 = vpop.f32.mrb[0].mxu0
  %v298 = vadd.f32 0.0, %v297
  %v299 = vpop.f32.mrb[0].mxu0
  %v300 = vpop.f32.mrb[0].mxu0
  %v301 = vadd.f32 0.0, %v300
  %v302 = vpop.f32.mrb[0].mxu0
  %303 = vdwg.mxu0
  %v304 = vadd.f32 %v241, %v298
  %v305 = vadd.f32 %v242, %v301
  %v306 = vmax.f32 %v304, 0.0
  %v307 = vmax.f32 %v305, 0.0
  %v308 = vld [vmem:[%s7] sm:$0xf]
  %v309 = vld [vmem:[%s7 + $0x4] sm:$0xf]
  %v310 = vld [vmem:[%s7 + $0x8] sm:$0xf]
  %v311 = vld [vmem:[%s7 + $0xc] sm:$0xf]
  %v312 = vld [vmem:[%s8] sm:$0x1]
  %v313 = vpack.c.bf16 %v307, %v306
  %v315 = vlaneseq
  %v316 = vshrl.u32 %v315, 7
  %v317 = vsub.s32 0, %v316
  %v318 = vrot.slane %v312, %v317
  %v324 = vunpack.c.l.b16 %v308
  %v325 = vunpack.c.l.b16 %v309
  %v326 = vunpack.c.l.b16 %v310
  %v327 = vunpack.c.l.b16 %v311
  %v328 = vpack.c.b16 %v325, %v324
  %v329 = vpack.c.b16 %v327, %v326
  %vm332 = vcmask 261120
  %v334 = vsel %vm332, %v313, 0
  %336 = vmatprep.subr.bf16.mxu0 0
  %337 = vmatpush1.bf16.msra.mxu0 %v328
  %338 = vmatprep.subr.bf16.mxu0 0
  %339 = vmatpush1.bf16.msra.mxu0 %v329
  %340 = vmatprep.subr.bf16.mxu0 0
  %341 = vmatpush1.bf16.msra.mxu0 0
  %342 = vmatprep.subr.bf16.mxu0 0
  %343 = vmatpush1.bf16.msra.mxu0 0
  %344 = vmatprep.subr.bf16.mxu0 0
  %345 = vmatpush1.bf16.msra.mxu0 0
  %346 = vmatprep.subr.bf16.mxu0 0
  %347 = vmatpush1.bf16.msra.mxu0 0
  %348 = vmatprep.subr.bf16.mxu0 0
  %349 = vmatpush1.bf16.msra.mxu0 0
  %350 = vmatprep.subr.bf16.mxu0 0
  %351 = vmatpush1.bf16.msra.mxu0 0
  %352 = vmatprep.subr.bf16.mxu0 0
  %353 = vmatpush1.bf16.msra.mxu0 0
  %354 = vmatprep.subr.bf16.mxu0 0
  %355 = vmatpush1.bf16.msra.mxu0 0
  %356 = vmatprep.subr.bf16.mxu0 0
  %357 = vmatpush1.bf16.msra.mxu0 0
  %358 = vmatprep.subr.bf16.mxu0 0
  %359 = vmatpush1.bf16.msra.mxu0 0
  %360 = vmatprep.subr.bf16.mxu0 0
  %361 = vmatpush1.bf16.msra.mxu0 0
  %362 = vmatprep.subr.bf16.mxu0 0
  %363 = vmatpush1.bf16.msra.mxu0 0
  %364 = vmatprep.subr.bf16.mxu0 0
  %365 = vmatpush1.bf16.msra.mxu0 0
  %366 = vmatprep.subr.bf16.mxu0 0
  %367 = vmatpush1.bf16.msra.mxu0 0
  %368 = vmatprep.mubr.bf16.mxu0 0
  %369 = vmatmul.mubr.bf16.gmra.mrb[0].mxu0 %v334
  %v370 = vpop.f32.mrb[0].mxu0
  %v371 = vadd.f32 %v318, %v370
  %v372 = vpop.f32.mrb[0].mxu0
  %v373 = vpop.f32.mrb[0].mxu0
  %v374 = vadd.f32 %v318, %v373
  %v375 = vpop.f32.mrb[0].mxu0
  %376 = vdwg.mxu0
  %v377 = vmax.f32 %v371, 0.0
  %v378 = vmax.f32 %v374, 0.0
  %v379 = vld [vmem:[%s9] sm:$0xf]
  %v380 = vld [vmem:[%s9 + $0x4] sm:$0xf]
  %v381 = vld [vmem:[%s10] sm:$0x1]
  %v382 = vpack.c.bf16 %v378, %v377
  %v384 = vlaneseq
  %v385 = vshrl.u32 %v384, 7
  %v386 = vsub.s32 0, %v385
  %v387 = vrot.slane %v381, %v386
  %v391 = vunpack.c.l.b16 %v379
  %v392 = vunpack.c.l.b16 %v380
  %v393 = vpack.c.b16 %v392, %v391
  %vm395 = vcmask 130048
  %v397 = vsel %vm395, %v382, 0
  %399 = vmatprep.subr.bf16.mxu0 0
  %400 = vmatpush1.bf16.msra.mxu0 %v393
  %401 = vmatprep.subr.bf16.mxu0 0
  %402 = vmatpush1.bf16.msra.mxu0 0
  %403 = vmatprep.subr.bf16.mxu0 0
  %404 = vmatpush1.bf16.msra.mxu0 0
  %405 = vmatprep.subr.bf16.mxu0 0
  %406 = vmatpush1.bf16.msra.mxu0 0
  %407 = vmatprep.subr.bf16.mxu0 0
  %408 = vmatpush1.bf16.msra.mxu0 0
  %409 = vmatprep.subr.bf16.mxu0 0
  %410 = vmatpush1.bf16.msra.mxu0 0
  %411 = vmatprep.subr.bf16.mxu0 0
  %412 = vmatpush1.bf16.msra.mxu0 0
  %413 = vmatprep.subr.bf16.mxu0 0
  %414 = vmatpush1.bf16.msra.mxu0 0
  %415 = vmatprep.subr.bf16.mxu0 0
  %416 = vmatpush1.bf16.msra.mxu0 0
  %417 = vmatprep.subr.bf16.mxu0 0
  %418 = vmatpush1.bf16.msra.mxu0 0
  %419 = vmatprep.subr.bf16.mxu0 0
  %420 = vmatpush1.bf16.msra.mxu0 0
  %421 = vmatprep.subr.bf16.mxu0 0
  %422 = vmatpush1.bf16.msra.mxu0 0
  %423 = vmatprep.subr.bf16.mxu0 0
  %424 = vmatpush1.bf16.msra.mxu0 0
  %425 = vmatprep.subr.bf16.mxu0 0
  %426 = vmatpush1.bf16.msra.mxu0 0
  %427 = vmatprep.subr.bf16.mxu0 0
  %428 = vmatpush1.bf16.msra.mxu0 0
  %429 = vmatprep.subr.bf16.mxu0 0
  %430 = vmatpush1.bf16.msra.mxu0 0
  %431 = vmatprep.mubr.bf16.mxu0 0
  %432 = vmatmul.mubr.bf16.gmra.mrb[0].mxu0 %v397
  %v433 = vpop.f32.mrb[0].mxu0
  %v434 = vadd.f32 %v387, %v433
  %v435 = vpop.f32.mrb[0].mxu0
  %v436 = vpop.f32.mrb[0].mxu0
  %v437 = vadd.f32 %v387, %v436
  %v438 = vpop.f32.mrb[0].mxu0
  %439 = vdwg.mxu0
  %vm440 = vcmask 15360
  %441 = vst.msk [vmem:[%s11] sm:$0xff] %vm440, %v434
  %442 = vst.msk [vmem:[%s11 + $0x8] sm:$0xff] %vm440, %v437
  // Predicated region
  $region46: #{tabular_mlp_pallas.1} parent=0 // pred_check
    _
  $region47: #{tabular_mlp_pallas.1} parent=0 // pred_check_branch
    %444 = sbr.rel (0) target = $region49
  $region48: #{tabular_mlp_pallas.1} parent=0 // pred_region
    _
  $region49: #{tabular_mlp_pallas.1} parent=0 // pred_fallthru
    _
  // Predicated region
  $region50: #{tabular_mlp_pallas.1} parent=0 // pred_check
    _
  $region51: #{tabular_mlp_pallas.1} parent=0 // pred_check_branch
    %446 = sbr.rel (0) target = $region53
  $region52: #{tabular_mlp_pallas.1} parent=0 // pred_region
    _
  $region53: #{tabular_mlp_pallas.1} parent=0 // pred_fallthru
    _

</llo_original>
